<compile_context>
chip_gen: v7x
topology: tpu7x:2x2x1
jax: 0.10.0
libtpu: 0.0.40
codegen_flags: <defaults>
</compile_context>

<pallas_src>
import functools

import jax
import jax.numpy as jnp
import numpy as np
from jax import lax
from jax.experimental import pallas as pl
from jax.experimental.pallas import tpu as pltpu

EPS = 1e-5


# ----------------------------------------------------------------------------- kernel
def _downsampling_kernel(x_ref, sel_ref, t1_ref, s1_ref, b1_ref,
                         t2_ref, s2_ref, b2_ref, out_ref, *, img_h, cin):
    """Fused 2x2 max-pool -> conv1(3x3,p=1)+BN+ReLU -> conv2(3x3,p=1)+BN+ReLU.

    Per grid step (NB images stacked on rows, lane = merged (w, c)):
      x_ref  : (NB*H, 2*W2*Cin)  f32; row r holds pre-pool rows 2h and 2h+1 side by side
      sel_ref: (W2*Cin, W*Cin)   bf16 0/1 even-column-pair selector
      t*_ref : (3, K, W*Cout)    bf16 block-Toeplitz conv weights (one slab per kh tap)
      s*_ref : (1, W*Cout)       f32 folded BN scale, tiled over w
      b*_ref : (1, W*Cout)       f32 folded BN shift (incl. conv bias), tiled over w
      out_ref: (NB*H, W*Cout)    f32 lane-dense output slab
    """
    half = x_ref.shape[1] // 2                     # W2 * Cin

    # ---- 2x2 max pool ----
    x2 = x_ref[...]
    vert = jnp.maximum(x2[:, :half], x2[:, half:])                  # (M, W2*Cin)
    # Horizontal neighbour via a lane roll by Cin (XLU slot, no relayout), then pick the
    # even column pairs with a single 0/1 selector matmul on the MXU.
    nbr = pltpu.roll(vert, shift=half - cin, axis=1)                # lane j <- lane j+Cin
    horiz = jnp.maximum(vert, nbr)
    pooled = jnp.dot(horiz.astype(jnp.bfloat16), sel_ref[...],
                     preferred_element_type=jnp.float32)            # (M, W*Cin)

    # ---- conv(3x3, pad=1) + folded BN + ReLU: 3 Toeplitz matmuls + sublane shift-adds --
    def conv_bn_relu(xm, t_ref, s_ref, b_ref):
        xb = xm.astype(jnp.bfloat16)
        y0 = jnp.dot(xb, t_ref[0], preferred_element_type=jnp.float32)   # kh = 0 tap
        y1 = jnp.dot(xb, t_ref[1], preferred_element_type=jnp.float32)   # kh = 1 tap
        y2 = jnp.dot(xb, t_ref[2], preferred_element_type=jnp.float32)   # kh = 2 tap
        m = y1.shape[0]
        # Per-image row index (several images are stacked along the sublane axis).
        r = lax.broadcasted_iota(jnp.int32, y1.shape, 0) % img_h
        # out[h] = y0[h-1] + y1[h] + y2[h+1], with zero padding at each image boundary.
        y0s = jnp.where(r == 0, 0.0, pltpu.roll(y0, shift=1, axis=0))
        y2s = jnp.where(r == img_h - 1, 0.0, pltpu.roll(y2, shift=m - 1, axis=0))
        acc = y0s + y1 + y2s
        return jnp.maximum(acc * s_ref[...] + b_ref[...], 0.0)           # (M, W*Cout)

    h1 = conv_bn_relu(pooled, t1_ref, s1_ref, b1_ref)
    out_ref[...] = conv_bn_relu(h1, t2_ref, s2_ref, b2_ref)              # lane-dense store


# ---------------------------------------------------------- one-time weight preparation
def _build_toeplitz(w, W):
    """w: (3, 3, C, F) HWIO conv weights -> T: (3, W*C, W*F) with
    T[kh, wi*C + c, wo*F + f] = w[kh, wi - wo + 1, c, f] (0 outside the 3 kw taps).
    Horizontal zero padding is implicit (out-of-range taps simply absent)."""
    KH, KW, C, F = w.shape
    wi = jnp.arange(W)[:, None]
    wo = jnp.arange(W)[None, :]
    d = wi - wo + (KW // 2)                            # kw tap index, shape (W, W)
    valid = (d >= 0) & (d < KW)
    dc = jnp.clip(d, 0, KW - 1)
    T = w[:, dc]                                       # (KH, W, W, C, F): [kh,wi,wo,c,f]
    T = T * valid[None, :, :, None, None].astype(w.dtype)
    return T.transpose(0, 1, 3, 2, 4).reshape(KH, W * C, W * F)


def _build_pool_selector(W, C):
    """(2*W*C, W*C) 0/1 matrix: sel[j, k] = 1 iff j = 2*kw*C + c and k = kw*C + c."""
    j = jnp.arange(2 * W * C)
    k = jnp.arange(W * C)
    sel = ((j[:, None] // C == 2 * (k[None, :] // C)) &
           (j[:, None] % C == k[None, :] % C))
    return sel.astype(jnp.float32)


def prepare_params(params, pool_w):
    """One-time (weight-load time) restructuring: Toeplitz weights + pool selector in
    bf16, BatchNorm running stats folded with the conv bias into f32 scale/shift."""
    W = pool_w
    w1 = params["w1"].astype(jnp.float32)
    w2 = params["w2"].astype(jnp.float32)
    cin = w1.shape[2]

    s1 = params["gamma1"] * lax.rsqrt(params["var1"] + EPS)
    t1 = params["beta1"] + (params["b1"] - params["mean1"]) * s1
    s2 = params["gamma2"] * lax.rsqrt(params["var2"] + EPS)
    t2 = params["beta2"] + (params["b2"] - params["mean2"]) * s2

    return {
        "sel": _build_pool_selector(W, cin).astype(jnp.bfloat16),   # (2W*Cin, W*Cin)
        "T1": _build_toeplitz(w1, W).astype(jnp.bfloat16),          # (3, W*Cin,  W*Cout)
        "T2": _build_toeplitz(w2, W).astype(jnp.bfloat16),          # (3, W*Cout, W*Cout)
        "s1": jnp.tile(s1, W)[None, :].astype(jnp.float32),         # (1, W*Cout)
        "b1": jnp.tile(t1, W)[None, :].astype(jnp.float32),
        "s2": jnp.tile(s2, W)[None, :].astype(jnp.float32),
        "b2": jnp.tile(t2, W)[None, :].astype(jnp.float32),
    }


# ------------------------------------------------------------------------------ forward
@jax.jit
def _forward(x_nchw, prep):
    N, Cin, H2, W2 = x_nchw.shape
    assert H2 % 2 == 0 and W2 % 2 == 0
    H, W = H2 // 2, W2 // 2
    WCin, WCout = prep["T1"].shape[1], prep["T1"].shape[2]
    assert WCin == W * Cin, "prepared params do not match the input width/channels"
    Cout = WCout // W

    # NCHW -> NHWC, then merge (row-pair, w, c) onto lanes: row r = (n, h) holds the two
    # pre-pool rows 2h and 2h+1.  Both reshapes are metadata-only on the NHWC slab.
    x = jnp.transpose(x_nchw, (0, 2, 3, 1)).astype(jnp.float32)
    x_rows = x.reshape(N * H, 2 * W2 * Cin)

    # Stack NB images per grid step to fill the MXU M dimension and amortize per-step
    # overhead (the kernel handles image boundaries with row masks).
    NB = 1
    for cand in range(1, N + 1):
        if N % cand == 0 and cand * H <= 256:
            NB = cand
    m_rows = NB * H

    kernel = functools.partial(_downsampling_kernel, img_h=H, cin=Cin)
    resident = lambda: pl.BlockSpec(memory_space=pltpu.MemorySpace.VMEM)  # grid-invariant,
    # whole-array VMEM residency -> single buffered, DMA'd once for the whole grid.

    out_rows = pl.pallas_call(
        kernel,
        out_shape=jax.ShapeDtypeStruct((N * H, WCout), jnp.float32),
        grid_spec=pltpu.PrefetchScalarGridSpec(
            num_scalar_prefetch=0,
            grid=(N // NB,),
            in_specs=[
                pl.BlockSpec((m_rows, 2 * W2 * Cin), lambda n: (n, 0)),
                resident(),                      # pool selector
                resident(),                      # T1
                resident(), resident(),          # s1, b1
                resident(),                      # T2
                resident(), resident(),          # s2, b2
            ],
            out_specs=pl.BlockSpec((m_rows, WCout), lambda n: (n, 0)),
        ),
        compiler_params=pltpu.CompilerParams(
            dimension_semantics=("parallel",),
            # Plenty for these shapes; raise toward the physical limit (128 MiB on
            # v5e/v6e, 64 MiB on v7x) together with the W-tile TODO for large images.
            vmem_limit_bytes=32 * 1024 * 1024,
        ),
    )(x_rows, prep["sel"], prep["T1"], prep["s1"], prep["b1"],
      prep["T2"], prep["s2"], prep["b2"])

    out = out_rows.reshape(N, H, W, Cout)            # free reshape
    return jnp.transpose(out, (0, 3, 1, 2))          # NCHW


def downsampling_block(x_nchw, prepared, *, training=False):
    """DownsamplingBlock forward. x: (N, Cin, H, W) -> (N, Cout, H//2, W//2)."""
    if training:
        # TODO(synk): training-mode Dropout2d / batch-statistics BatchNorm not implemented.
        raise NotImplementedError("Pallas DownsamplingBlock implements eval mode only.")
    return _forward(x_nchw, prepared)


# ---------------------------------------------------------------------- params/reference
def init_params(key, cin, cout):
    ks = jax.random.split(key, 12)
    return {
        "w1": 0.1 * jax.random.normal(ks[0], (3, 3, cin, cout), jnp.float32),
        "b1": 0.1 * jax.random.normal(ks[1], (cout,), jnp.float32),
        "gamma1": 1.0 + 0.1 * jax.random.normal(ks[2], (cout,), jnp.float32),
        "beta1": 0.1 * jax.random.normal(ks[3], (cout,), jnp.float32),
        "mean1": 0.1 * jax.random.normal(ks[4], (cout,), jnp.float32),
        "var1": 0.5 + jnp.abs(jax.random.normal(ks[5], (cout,), jnp.float32)),
        "w2": 0.1 * jax.random.normal(ks[6], (3, 3, cout, cout), jnp.float32),
        "b2": 0.1 * jax.random.normal(ks[7], (cout,), jnp.float32),
        "gamma2": 1.0 + 0.1 * jax.random.normal(ks[8], (cout,), jnp.float32),
        "beta2": 0.1 * jax.random.normal(ks[9], (cout,), jnp.float32),
        "mean2": 0.1 * jax.random.normal(ks[10], (cout,), jnp.float32),
        "var2": 0.5 + jnp.abs(jax.random.normal(ks[11], (cout,), jnp.float32)),
    }


def reference_forward(x_nchw, p):
    """Pure-JAX reference matching PyTorch eval-mode semantics (NCHW)."""
    N, C, H, W = x_nchw.shape
    x = x_nchw.reshape(N, C, H // 2, 2, W // 2, 2).max(axis=(3, 5))

    def conv_bn_relu(x, w, b, g, be, m, v):
        y = lax.conv_general_dilated(
            x, w, window_strides=(1, 1), padding=((1, 1), (1, 1)),
            dimension_numbers=("NCHW", "HWIO", "NCHW"))
        y = y + b[None, :, None, None]
        y = (y - m[None, :, None, None]) / jnp.sqrt(v[None, :, None, None] + EPS)
        y = y * g[None, :, None, None] + be[None, :, None, None]
        return jnp.maximum(y, 0.0)

    x = conv_bn_relu(x, p["w1"], p["b1"], p["gamma1"], p["beta1"], p["mean1"], p["var1"])
    x = conv_bn_relu(x, p["w2"], p["b2"], p["gamma2"], p["beta2"], p["mean2"], p["var2"])
    return x


if __name__ == "__main__":
    key = jax.random.PRNGKey(0)
    k_x, k_p = jax.random.split(key)

    N, Cin, Cout, H2, W2 = 2, 4, 8, 16, 16
    x = jax.random.normal(k_x, (N, Cin, H2, W2), jnp.float32)   # NCHW, like PyTorch
    params = init_params(k_p, Cin, Cout)
    prep = prepare_params(params, W2 // 2)                       # once, at weight-load time

    out = jax.block_until_ready(downsampling_block(x, prep))
    ref = jax.block_until_ready(reference_forward(x, params))

    assert out.shape == (N, Cout, H2 // 2, W2 // 2), out.shape
    assert out.dtype == jnp.float32
    # bf16 MXU operands with f32 accumulation -> ~1e-2-level absolute agreement.
    np.testing.assert_allclose(np.asarray(out), np.asarray(ref), rtol=2e-2, atol=2e-2)

    print("KERNEL_OK")
</pallas_src>

<mosaic_0001>
module attributes {stable_mosaic.version = 11 : i64} {
  func.func @_downsampling_kernel(%arg0: i32, %arg1: memref<16x128xf32, #tpu.memory_space<vmem>>, %arg2: memref<64x32xbf16, #tpu.memory_space<vmem>>, %arg3: memref<3x32x64xbf16, #tpu.memory_space<vmem>>, %arg4: memref<1x64xf32, #tpu.memory_space<vmem>>, %arg5: memref<1x64xf32, #tpu.memory_space<vmem>>, %arg6: memref<3x64x64xbf16, #tpu.memory_space<vmem>>, %arg7: memref<1x64xf32, #tpu.memory_space<vmem>>, %arg8: memref<1x64xf32, #tpu.memory_space<vmem>>, %arg9: memref<16x64xf32, #tpu.memory_space<vmem>>) attributes {dimension_semantics = [#tpu.dimension_semantics<parallel>], iteration_bounds = array<i64: 1>, scalar_prefetch = 0 : i64, scratch_operands = 0 : i64, tpu.core_type = #tpu.core_type<tc>, window_params = [{transform_indices = @transform_0, window_bounds = array<i64: 16, 128>}, {pipeline_mode = #tpu.pipeline_mode<synchronous>, transform_indices = @transform_1, window_bounds = array<i64: 64, 32>}, {pipeline_mode = #tpu.pipeline_mode<synchronous>, transform_indices = @transform_2, window_bounds = array<i64: 3, 32, 64>}, {pipeline_mode = #tpu.pipeline_mode<synchronous>, transform_indices = @transform_3, window_bounds = array<i64: 1, 64>}, {pipeline_mode = #tpu.pipeline_mode<synchronous>, transform_indices = @transform_4, window_bounds = array<i64: 1, 64>}, {pipeline_mode = #tpu.pipeline_mode<synchronous>, transform_indices = @transform_5, window_bounds = array<i64: 3, 64, 64>}, {pipeline_mode = #tpu.pipeline_mode<synchronous>, transform_indices = @transform_6, window_bounds = array<i64: 1, 64>}, {pipeline_mode = #tpu.pipeline_mode<synchronous>, transform_indices = @transform_7, window_bounds = array<i64: 1, 64>}, {transform_indices = @transform_8, window_bounds = array<i64: 16, 64>}]} {
    %c0 = arith.constant 0 : index
    %c0_0 = arith.constant 0 : index
    %0 = vector.load %arg1[%c0, %c0_0] : memref<16x128xf32, #tpu.memory_space<vmem>>, vector<16x128xf32>
    %1 = vector.extract_strided_slice %0 {offsets = [0, 0], sizes = [16, 64], strides = [1, 1]} : vector<16x128xf32> to vector<16x64xf32>
    %2 = vector.extract_strided_slice %0 {offsets = [0, 64], sizes = [16, 64], strides = [1, 1]} : vector<16x128xf32> to vector<16x64xf32>
    %3 = arith.maximumf %1, %2 : vector<16x64xf32>
    %c60_i32 = arith.constant 60 : i32
    %4 = tpu.dynamic_rotate %3 by %c60_i32 dim 1 : vector<16x64xf32>, i32 -> vector<16x64xf32>
    %5 = arith.maximumf %3, %4 : vector<16x64xf32>
    %6 = arith.truncf %5 : vector<16x64xf32> to vector<16x64xbf16>
    %c0_1 = arith.constant 0 : index
    %c0_2 = arith.constant 0 : index
    %7 = vector.load %arg2[%c0_1, %c0_2] : memref<64x32xbf16, #tpu.memory_space<vmem>>, vector<64x32xbf16>
    %cst = arith.constant dense<0.000000e+00> : vector<16x32xf32>
    %8 = tpu.matmul %6, %7, %cst {dimension_numbers = #tpu.dot_dimension_numbers<[1], [0], [0], [1], [0, 0, 1, 1], [], []>} : vector<16x64xbf16>, vector<64x32xbf16>, vector<16x32xf32> -> vector<16x32xf32>
    %9 = arith.truncf %8 : vector<16x32xf32> to vector<16x32xbf16>
    %c0_3 = arith.constant 0 : index
    %c0_4 = arith.constant 0 : index
    %c0_5 = arith.constant 0 : index
    %10 = vector.load %arg3[%c0_3, %c0_4, %c0_5] : memref<3x32x64xbf16, #tpu.memory_space<vmem>>, vector<1x32x64xbf16>
    %11 = vector.shape_cast %10 : vector<1x32x64xbf16> to vector<32x64xbf16>
    %cst_6 = arith.constant dense<0.000000e+00> : vector<16x64xf32>
    %12 = tpu.matmul %9, %11, %cst_6 {dimension_numbers = #tpu.dot_dimension_numbers<[1], [0], [0], [1], [0, 0, 1, 1], [], []>} : vector<16x32xbf16>, vector<32x64xbf16>, vector<16x64xf32> -> vector<16x64xf32>
    %c1 = arith.constant 1 : index
    %c0_7 = arith.constant 0 : index
    %c0_8 = arith.constant 0 : index
    %13 = vector.load %arg3[%c1, %c0_7, %c0_8] : memref<3x32x64xbf16, #tpu.memory_space<vmem>>, vector<1x32x64xbf16>
    %14 = vector.shape_cast %13 : vector<1x32x64xbf16> to vector<32x64xbf16>
    %cst_9 = arith.constant dense<0.000000e+00> : vector<16x64xf32>
    %15 = tpu.matmul %9, %14, %cst_9 {dimension_numbers = #tpu.dot_dimension_numbers<[1], [0], [0], [1], [0, 0, 1, 1], [], []>} : vector<16x32xbf16>, vector<32x64xbf16>, vector<16x64xf32> -> vector<16x64xf32>
    %c2 = arith.constant 2 : index
    %c0_10 = arith.constant 0 : index
    %c0_11 = arith.constant 0 : index
    %16 = vector.load %arg3[%c2, %c0_10, %c0_11] : memref<3x32x64xbf16, #tpu.memory_space<vmem>>, vector<1x32x64xbf16>
    %17 = vector.shape_cast %16 : vector<1x32x64xbf16> to vector<32x64xbf16>
    %cst_12 = arith.constant dense<0.000000e+00> : vector<16x64xf32>
    %18 = tpu.matmul %9, %17, %cst_12 {dimension_numbers = #tpu.dot_dimension_numbers<[1], [0], [0], [1], [0, 0, 1, 1], [], []>} : vector<16x32xbf16>, vector<32x64xbf16>, vector<16x64xf32> -> vector<16x64xf32>
    %19 = tpu.iota {dimensions = array<i32: 0>} : vector<16x64xi32>
    %c8_i32 = arith.constant 8 : i32
    %c0_i32 = arith.constant 0 : i32
    %20 = arith.cmpi eq, %c8_i32, %c0_i32 : i32
    %c1_i32 = arith.constant 1 : i32
    %21 = arith.select %20, %c1_i32, %c8_i32 : i32
    %22 = vector.broadcast %21 : i32 to vector<16x64xi32>
    %23 = arith.remsi %19, %22 : vector<16x64xi32>
    %c0_i32_13 = arith.constant 0 : i32
    %24 = vector.broadcast %c0_i32_13 : i32 to vector<16x64xi32>
    %25 = arith.cmpi ne, %23, %24 : vector<16x64xi32>
    %c0_i32_14 = arith.constant 0 : i32
    %26 = vector.broadcast %c0_i32_14 : i32 to vector<16x64xi32>
    %27 = arith.cmpi slt, %23, %26 : vector<16x64xi32>
    %c0_i32_15 = arith.constant 0 : i32
    %28 = arith.cmpi slt, %21, %c0_i32_15 : i32
    %29 = vector.broadcast %28 : i1 to vector<16x64xi1>
    %30 = vector.broadcast %29 : vector<16x64xi1> to vector<16x64xi1>
    %31 = arith.xori %27, %30 : vector<16x64xi1>
    %32 = arith.andi %31, %25 : vector<16x64xi1>
    %33 = vector.broadcast %21 : i32 to vector<16x64xi32>
    %34 = arith.addi %23, %33 : vector<16x64xi32>
    %35 = arith.select %32, %34, %23 : vector<16x64xi1>, vector<16x64xi32>
    %c0_i32_16 = arith.constant 0 : i32
    %36 = vector.broadcast %c0_i32_16 : i32 to vector<16x64xi32>
    %37 = arith.cmpi eq, %35, %36 : vector<16x64xi32>
    %c1_i32_17 = arith.constant 1 : i32
    %38 = tpu.dynamic_rotate %12 by %c1_i32_17 dim 0 : vector<16x64xf32>, i32 -> vector<16x64xf32>
    %cst_18 = arith.constant 0.000000e+00 : f32
    %39 = vector.broadcast %cst_18 : f32 to vector<16x64xf32>
    %40 = arith.select %37, %39, %38 : vector<16x64xi1>, vector<16x64xf32>
    %c7_i32 = arith.constant 7 : i32
    %41 = vector.broadcast %c7_i32 : i32 to vector<16x64xi32>
    %42 = arith.cmpi eq, %35, %41 : vector<16x64xi32>
    %c15_i32 = arith.constant 15 : i32
    %43 = tpu.dynamic_rotate %18 by %c15_i32 dim 0 : vector<16x64xf32>, i32 -> vector<16x64xf32>
    %cst_19 = arith.constant 0.000000e+00 : f32
    %44 = vector.broadcast %cst_19 : f32 to vector<16x64xf32>
    %45 = arith.select %42, %44, %43 : vector<16x64xi1>, vector<16x64xf32>
    %46 = arith.addf %40, %15 : vector<16x64xf32>
    %47 = arith.addf %46, %45 : vector<16x64xf32>
    %c0_20 = arith.constant 0 : index
    %c0_21 = arith.constant 0 : index
    %48 = vector.load %arg4[%c0_20, %c0_21] : memref<1x64xf32, #tpu.memory_space<vmem>>, vector<1x64xf32>
    %49 = vector.broadcast %48 : vector<1x64xf32> to vector<16x64xf32>
    %50 = arith.mulf %47, %49 : vector<16x64xf32>
    %c0_22 = arith.constant 0 : index
    %c0_23 = arith.constant 0 : index
    %51 = vector.load %arg5[%c0_22, %c0_23] : memref<1x64xf32, #tpu.memory_space<vmem>>, vector<1x64xf32>
    %52 = vector.broadcast %51 : vector<1x64xf32> to vector<16x64xf32>
    %53 = arith.addf %50, %52 : vector<16x64xf32>
    %cst_24 = arith.constant 0.000000e+00 : f32
    %54 = vector.broadcast %cst_24 : f32 to vector<16x64xf32>
    %55 = arith.maximumf %53, %54 : vector<16x64xf32>
    %56 = arith.truncf %55 : vector<16x64xf32> to vector<16x64xbf16>
    %c0_25 = arith.constant 0 : index
    %c0_26 = arith.constant 0 : index
    %c0_27 = arith.constant 0 : index
    %57 = vector.load %arg6[%c0_25, %c0_26, %c0_27] : memref<3x64x64xbf16, #tpu.memory_space<vmem>>, vector<1x64x64xbf16>
    %58 = vector.shape_cast %57 : vector<1x64x64xbf16> to vector<64x64xbf16>
    %cst_28 = arith.constant dense<0.000000e+00> : vector<16x64xf32>
    %59 = tpu.matmul %56, %58, %cst_28 {dimension_numbers = #tpu.dot_dimension_numbers<[1], [0], [0], [1], [0, 0, 1, 1], [], []>} : vector<16x64xbf16>, vector<64x64xbf16>, vector<16x64xf32> -> vector<16x64xf32>
    %c1_29 = arith.constant 1 : index
    %c0_30 = arith.constant 0 : index
    %c0_31 = arith.constant 0 : index
    %60 = vector.load %arg6[%c1_29, %c0_30, %c0_31] : memref<3x64x64xbf16, #tpu.memory_space<vmem>>, vector<1x64x64xbf16>
    %61 = vector.shape_cast %60 : vector<1x64x64xbf16> to vector<64x64xbf16>
    %cst_32 = arith.constant dense<0.000000e+00> : vector<16x64xf32>
    %62 = tpu.matmul %56, %61, %cst_32 {dimension_numbers = #tpu.dot_dimension_numbers<[1], [0], [0], [1], [0, 0, 1, 1], [], []>} : vector<16x64xbf16>, vector<64x64xbf16>, vector<16x64xf32> -> vector<16x64xf32>
    %c2_33 = arith.constant 2 : index
    %c0_34 = arith.constant 0 : index
    %c0_35 = arith.constant 0 : index
    %63 = vector.load %arg6[%c2_33, %c0_34, %c0_35] : memref<3x64x64xbf16, #tpu.memory_space<vmem>>, vector<1x64x64xbf16>
    %64 = vector.shape_cast %63 : vector<1x64x64xbf16> to vector<64x64xbf16>
    %cst_36 = arith.constant dense<0.000000e+00> : vector<16x64xf32>
    %65 = tpu.matmul %56, %64, %cst_36 {dimension_numbers = #tpu.dot_dimension_numbers<[1], [0], [0], [1], [0, 0, 1, 1], [], []>} : vector<16x64xbf16>, vector<64x64xbf16>, vector<16x64xf32> -> vector<16x64xf32>
    %66 = tpu.iota {dimensions = array<i32: 0>} : vector<16x64xi32>
    %c8_i32_37 = arith.constant 8 : i32
    %c0_i32_38 = arith.constant 0 : i32
    %67 = arith.cmpi eq, %c8_i32_37, %c0_i32_38 : i32
    %c1_i32_39 = arith.constant 1 : i32
    %68 = arith.select %67, %c1_i32_39, %c8_i32_37 : i32
    %69 = vector.broadcast %68 : i32 to vector<16x64xi32>
    %70 = arith.remsi %66, %69 : vector<16x64xi32>
    %c0_i32_40 = arith.constant 0 : i32
    %71 = vector.broadcast %c0_i32_40 : i32 to vector<16x64xi32>
    %72 = arith.cmpi ne, %70, %71 : vector<16x64xi32>
    %c0_i32_41 = arith.constant 0 : i32
    %73 = vector.broadcast %c0_i32_41 : i32 to vector<16x64xi32>
    %74 = arith.cmpi slt, %70, %73 : vector<16x64xi32>
    %c0_i32_42 = arith.constant 0 : i32
    %75 = arith.cmpi slt, %68, %c0_i32_42 : i32
    %76 = vector.broadcast %75 : i1 to vector<16x64xi1>
    %77 = vector.broadcast %76 : vector<16x64xi1> to vector<16x64xi1>
    %78 = arith.xori %74, %77 : vector<16x64xi1>
    %79 = arith.andi %78, %72 : vector<16x64xi1>
    %80 = vector.broadcast %68 : i32 to vector<16x64xi32>
    %81 = arith.addi %70, %80 : vector<16x64xi32>
    %82 = arith.select %79, %81, %70 : vector<16x64xi1>, vector<16x64xi32>
    %c0_i32_43 = arith.constant 0 : i32
    %83 = vector.broadcast %c0_i32_43 : i32 to vector<16x64xi32>
    %84 = arith.cmpi eq, %82, %83 : vector<16x64xi32>
    %c1_i32_44 = arith.constant 1 : i32
    %85 = tpu.dynamic_rotate %59 by %c1_i32_44 dim 0 : vector<16x64xf32>, i32 -> vector<16x64xf32>
    %cst_45 = arith.constant 0.000000e+00 : f32
    %86 = vector.broadcast %cst_45 : f32 to vector<16x64xf32>
    %87 = arith.select %84, %86, %85 : vector<16x64xi1>, vector<16x64xf32>
    %c7_i32_46 = arith.constant 7 : i32
    %88 = vector.broadcast %c7_i32_46 : i32 to vector<16x64xi32>
    %89 = arith.cmpi eq, %82, %88 : vector<16x64xi32>
    %c15_i32_47 = arith.constant 15 : i32
    %90 = tpu.dynamic_rotate %65 by %c15_i32_47 dim 0 : vector<16x64xf32>, i32 -> vector<16x64xf32>
    %cst_48 = arith.constant 0.000000e+00 : f32
    %91 = vector.broadcast %cst_48 : f32 to vector<16x64xf32>
    %92 = arith.select %89, %91, %90 : vector<16x64xi1>, vector<16x64xf32>
    %93 = arith.addf %87, %62 : vector<16x64xf32>
    %94 = arith.addf %93, %92 : vector<16x64xf32>
    %c0_49 = arith.constant 0 : index
    %c0_50 = arith.constant 0 : index
    %95 = vector.load %arg7[%c0_49, %c0_50] : memref<1x64xf32, #tpu.memory_space<vmem>>, vector<1x64xf32>
    %96 = vector.broadcast %95 : vector<1x64xf32> to vector<16x64xf32>
    %97 = arith.mulf %94, %96 : vector<16x64xf32>
    %c0_51 = arith.constant 0 : index
    %c0_52 = arith.constant 0 : index
    %98 = vector.load %arg8[%c0_51, %c0_52] : memref<1x64xf32, #tpu.memory_space<vmem>>, vector<1x64xf32>
    %99 = vector.broadcast %98 : vector<1x64xf32> to vector<16x64xf32>
    %100 = arith.addf %97, %99 : vector<16x64xf32>
    %cst_53 = arith.constant 0.000000e+00 : f32
    %101 = vector.broadcast %cst_53 : f32 to vector<16x64xf32>
    %102 = arith.maximumf %100, %101 : vector<16x64xf32>
    %c0_54 = arith.constant 0 : index
    %c0_55 = arith.constant 0 : index
    %103 = vector.load %arg9[%c0_54, %c0_55] : memref<16x64xf32, #tpu.memory_space<vmem>>, vector<16x64xf32>
    tpu.vector_store %arg9[%c0_54, %c0_55], %102 {strides = array<i32>} : memref<16x64xf32, #tpu.memory_space<vmem>>, vector<16x64xf32>,
    return
  }
  func.func @transform_0(%arg0: i32) -> (i32, i32) {
    %c0_i32 = arith.constant 0 : i32
    %c0_i32_0 = arith.constant 0 : i32
    return %arg0, %c0_i32 : i32, i32
  }
  func.func @transform_1(%arg0: i32) -> (i32, i32) {
    %c0_i32 = arith.constant 0 : i32
    %c0_i32_0 = arith.constant 0 : i32
    %c0_i32_1 = arith.constant 0 : i32
    return %c0_i32, %c0_i32_0 : i32, i32
  }
  func.func @transform_2(%arg0: i32) -> (i32, i32, i32) {
    %c0_i32 = arith.constant 0 : i32
    %c0_i32_0 = arith.constant 0 : i32
    %c0_i32_1 = arith.constant 0 : i32
    %c0_i32_2 = arith.constant 0 : i32
    return %c0_i32, %c0_i32_0, %c0_i32_1 : i32, i32, i32
  }
  func.func @transform_3(%arg0: i32) -> (i32, i32) {
    %c0_i32 = arith.constant 0 : i32
    %c0_i32_0 = arith.constant 0 : i32
    %c0_i32_1 = arith.constant 0 : i32
    return %c0_i32, %c0_i32_0 : i32, i32
  }
  func.func @transform_4(%arg0: i32) -> (i32, i32) {
    %c0_i32 = arith.constant 0 : i32
    %c0_i32_0 = arith.constant 0 : i32
    %c0_i32_1 = arith.constant 0 : i32
    return %c0_i32, %c0_i32_0 : i32, i32
  }
  func.func @transform_5(%arg0: i32) -> (i32, i32, i32) {
    %c0_i32 = arith.constant 0 : i32
    %c0_i32_0 = arith.constant 0 : i32
    %c0_i32_1 = arith.constant 0 : i32
    %c0_i32_2 = arith.constant 0 : i32
    return %c0_i32, %c0_i32_0, %c0_i32_1 : i32, i32, i32
  }
  func.func @transform_6(%arg0: i32) -> (i32, i32) {
    %c0_i32 = arith.constant 0 : i32
    %c0_i32_0 = arith.constant 0 : i32
    %c0_i32_1 = arith.constant 0 : i32
    return %c0_i32, %c0_i32_0 : i32, i32
  }
  func.func @transform_7(%arg0: i32) -> (i32, i32) {
    %c0_i32 = arith.constant 0 : i32
    %c0_i32_0 = arith.constant 0 : i32
    %c0_i32_1 = arith.constant 0 : i32
    return %c0_i32, %c0_i32_0 : i32, i32
  }
  func.func @transform_8(%arg0: i32) -> (i32, i32) {
    %c0_i32 = arith.constant 0 : i32
    %c0_i32_0 = arith.constant 0 : i32
    return %arg0, %c0_i32 : i32, i32
  }
}

</mosaic_0001>

<llo_original>
// kernel: _forward.1
$region0: #{_forward.1}
  #allocation0 [shape = 'u32[]', space=smem, size = 0x4, offset = 0x4, fixed_abs, tag = 'smem constant byte address 0x4 - core index']
  #allocation1 [shape = 'u32[144,128]{1,0:T(1,128)}', space=vmem, size = 0x12000, scoped, tag = 'internal scratch']
  %s0 = inlined_call_operand.vmem [shape: f32[16,128], index: 0, kind: input, shape index: {}]
  %s1 = inlined_call_operand.vmem [shape: bf16[64,32], index: 1, kind: input, shape index: {}]
  %s2 = inlined_call_operand.vmem [shape: bf16[3,32,64], index: 2, kind: input, shape index: {}]
  %s3 = inlined_call_operand.vmem [shape: f32[1,64], index: 3, kind: input, shape index: {}]
  %s4 = inlined_call_operand.vmem [shape: f32[1,64], index: 4, kind: input, shape index: {}]
  %s5 = inlined_call_operand.vmem [shape: bf16[3,64,64], index: 5, kind: input, shape index: {}]
  %s6 = inlined_call_operand.vmem [shape: f32[1,64], index: 6, kind: input, shape index: {}]
  %s7 = inlined_call_operand.vmem [shape: f32[1,64], index: 7, kind: input, shape index: {}]
  %s8 = inlined_call_operand.vmem [shape: f32[16,64], index: 8, kind: output, shape index: {}]
  %s9 = sld [smem:[#allocation0]]
  $region42: #{_forward.1} parent=0
    _
  %s11 = ssub.s32 1, %s9
  %s12 = scalar_select 0, %s11, %s9
  // Predicated region
  $region2: #{_forward.1} parent=0 // pred_check
    _
  $region3: #{_forward.1} parent=0 // pred_check_branch
    %14 = sbr.rel (0) target = $region5
  $region4: #{_forward.1} parent=0 // pred_region
    _
  $region5: #{_forward.1} parent=0 // pred_fallthru
    _
  // Predicated region
  $region6: #{_forward.1} parent=0 // pred_check
    _
  $region7: #{_forward.1} parent=0 // pred_check_branch
    %16 = sbr.rel (0) target = $region9
  $region8: #{_forward.1} parent=0 // pred_region
    _
  $region9: #{_forward.1} parent=0 // pred_fallthru
    _
  // Predicated region
  $region10: #{_forward.1} parent=0 // pred_check
    _
  $region11: #{_forward.1} parent=0 // pred_check_branch
    %18 = sbr.rel (0) target = $region13
  $region12: #{_forward.1} parent=0 // pred_region
    _
  $region13: #{_forward.1} parent=0 // pred_fallthru
    _
  // Predicated region
  $region14: #{_forward.1} parent=0 // pred_check
    _
  $region15: #{_forward.1} parent=0 // pred_check_branch
    %20 = sbr.rel (0) target = $region17
  $region16: #{_forward.1} parent=0 // pred_region
    _
  $region17: #{_forward.1} parent=0 // pred_fallthru
    _
  // Predicated region
  $region18: #{_forward.1} parent=0 // pred_check
    _
  $region19: #{_forward.1} parent=0 // pred_check_branch
    %22 = sbr.rel (0) target = $region21
  $region20: #{_forward.1} parent=0 // pred_region
    _
  $region21: #{_forward.1} parent=0 // pred_fallthru
    _
  // Predicated region
  $region22: #{_forward.1} parent=0 // pred_check
    _
  $region23: #{_forward.1} parent=0 // pred_check_branch
    %24 = sbr.rel (0) target = $region25
  $region24: #{_forward.1} parent=0 // pred_region
    _
  $region25: #{_forward.1} parent=0 // pred_fallthru
    _
  // Predicated region
  $region26: #{_forward.1} parent=0 // pred_check
    _
  $region27: #{_forward.1} parent=0 // pred_check_branch
    %26 = sbr.rel (0) target = $region29
  $region28: #{_forward.1} parent=0 // pred_region
    _
  $region29: #{_forward.1} parent=0 // pred_fallthru
    _
  // Predicated region
  $region30: #{_forward.1} parent=0 // pred_check
    _
  $region31: #{_forward.1} parent=0 // pred_check_branch
    %28 = sbr.rel (0) target = $region33
  $region32: #{_forward.1} parent=0 // pred_region
    _
  $region33: #{_forward.1} parent=0 // pred_fallthru
    _
  %v30 = vld [vmem:[%s0] sm:$0xff]
  %v31 = vld [vmem:[%s0 + $0x8] sm:$0xff]
  %34 = vrot.lane.b32.xlu0 %v30, 64
  %v35 = vpop.permute.xlu0 %34
  %36 = vrot.lane.b32.xlu0 %v31, 64
  %v37 = vpop.permute.xlu0 %36
  %v40 = vmax.f32 %v30, %v35
  %v41 = vmax.f32 %v31, %v37
  %vm42 = vcmask 1048064
  %43 = vrot.lane.b32.xlu0 %v40, 64
  %v44 = vpop.permute.xlu0 %43
  %v45 = vsel %vm42, %v44, %v40
  %46 = vrot.lane.b32.xlu0 %v41, 64
  %v47 = vpop.permute.xlu0 %46
  %v48 = vsel %vm42, %v47, %v41
  %49 = vrot.lane.b32.xlu0 %v45, 64
  %v50 = vpop.permute.xlu0 %49
  %51 = vrot.lane.b32.xlu0 %v48, 64
  %v52 = vpop.permute.xlu0 %51
  %v53 = vsel %vm42, %v50, %v40
  %v54 = vsel %vm42, %v52, %v41
  %57 = vrot.lane.b32.xlu0 %v53, 124
  %v58 = vpop.permute.xlu0 %57
  %59 = vrot.lane.b32.xlu0 %v54, 124
  %v60 = vpop.permute.xlu0 %59
  %v63 = vmax.f32 %v40, %v58
  %v64 = vmax.f32 %v41, %v60
  %v65 = vpack.c.bf16 %v64, %v63
  %v66 = vld [vmem:[%s1] sm:$0xf]
  %v67 = vld [vmem:[%s1 + $0x4] sm:$0xf]
  %v68 = vld [vmem:[%s1 + $0x8] sm:$0xf]
  %v69 = vld [vmem:[%s1 + $0xc] sm:$0xf]
  %v70 = vld [vmem:[%s1 + $0x10] sm:$0xf]
  %v71 = vld [vmem:[%s1 + $0x14] sm:$0xf]
  %v72 = vld [vmem:[%s1 + $0x18] sm:$0xf]
  %v73 = vld [vmem:[%s1 + $0x1c] sm:$0xf]
  %v82 = vunpack.c.l.b16 %v66
  %v83 = vunpack.c.l.b16 %v67
  %v84 = vunpack.c.l.b16 %v68
  %v85 = vunpack.c.l.b16 %v69
  %v86 = vunpack.c.l.b16 %v70
  %v87 = vunpack.c.l.b16 %v71
  %v88 = vunpack.c.l.b16 %v72
  %v89 = vunpack.c.l.b16 %v73
  %v90 = vpack.c.b16 %v83, %v82
  %v91 = vpack.c.b16 %v85, %v84
  %v92 = vpack.c.b16 %v87, %v86
  %v93 = vpack.c.b16 %v89, %v88
  %vm98 = vcmask 523264
  %v100 = vsel %vm98, %v65, 0
  %102 = vmatprep.subr.bf16.mxu0 0
  %103 = vmatpush1.bf16.msra.mxu0 %v90
  %104 = vmatprep.subr.bf16.mxu0 0
  %105 = vmatpush1.bf16.msra.mxu0 %v91
  %106 = vmatprep.subr.bf16.mxu0 0
  %107 = vmatpush1.bf16.msra.mxu0 %v92
  %108 = vmatprep.subr.bf16.mxu0 0
  %109 = vmatpush1.bf16.msra.mxu0 %v93
  %110 = vmatprep.subr.bf16.mxu0 0
  %111 = vmatpush1.bf16.msra.mxu0 0
  %112 = vmatprep.subr.bf16.mxu0 0
  %113 = vmatpush1.bf16.msra.mxu0 0
  %114 = vmatprep.subr.bf16.mxu0 0
  %115 = vmatpush1.bf16.msra.mxu0 0
  %116 = vmatprep.subr.bf16.mxu0 0
  %117 = vmatpush1.bf16.msra.mxu0 0
  %118 = vmatprep.subr.bf16.mxu0 0
  %119 = vmatpush1.bf16.msra.mxu0 0
  %120 = vmatprep.subr.bf16.mxu0 0
  %121 = vmatpush1.bf16.msra.mxu0 0
  %122 = vmatprep.subr.bf16.mxu0 0
  %123 = vmatpush1.bf16.msra.mxu0 0
  %124 = vmatprep.subr.bf16.mxu0 0
  %125 = vmatpush1.bf16.msra.mxu0 0
  %126 = vmatprep.subr.bf16.mxu0 0
  %127 = vmatpush1.bf16.msra.mxu0 0
  %128 = vmatprep.subr.bf16.mxu0 0
  %129 = vmatpush1.bf16.msra.mxu0 0
  %130 = vmatprep.subr.bf16.mxu0 0
  %131 = vmatpush1.bf16.msra.mxu0 0
  %132 = vmatprep.subr.bf16.mxu0 0
  %133 = vmatpush1.bf16.msra.mxu0 0
  %134 = vmatprep.mubr.bf16.mxu0 0
  %135 = vmatmul.mubr.bf16.gmra.mrb[0].mxu0 %v100
  %v136 = vpop.f32.mrb[0].mxu0
  %v137 = vadd.f32 0.0, %v136
  %v138 = vpop.f32.mrb[0].mxu0
  %v139 = vpop.f32.mrb[0].mxu0
  %v140 = vadd.f32 0.0, %v139
  %v141 = vpop.f32.mrb[0].mxu0
  %142 = vdwg.mxu0
  %v143 = vpack.c.bf16 %v140, %v137
  %v144 = vld [vmem:[%s2] sm:$0xf]
  %v145 = vld [vmem:[%s2 + $0x4] sm:$0xf]
  %v146 = vld [vmem:[%s2 + $0x8] sm:$0xf]
  %v147 = vld [vmem:[%s2 + $0xc] sm:$0xf]
  %v152 = vunpack.c.l.b16 %v144
  %v153 = vunpack.c.l.b16 %v145
  %v154 = vunpack.c.l.b16 %v146
  %v155 = vunpack.c.l.b16 %v147
  %v156 = vpack.c.b16 %v153, %v152
  %v157 = vpack.c.b16 %v155, %v154
  %vm160 = vcmask 261120
  %v162 = vsel %vm160, %v143, 0
  %164 = vmatprep.subr.bf16.mxu0 0
  %165 = vmatpush1.bf16.msra.mxu0 %v156
  %166 = vmatprep.subr.bf16.mxu0 0
  %167 = vmatpush1.bf16.msra.mxu0 %v157
  %168 = vmatprep.subr.bf16.mxu0 0
  %169 = vmatpush1.bf16.msra.mxu0 0
  %170 = vmatprep.subr.bf16.mxu0 0
  %171 = vmatpush1.bf16.msra.mxu0 0
  %172 = vmatprep.subr.bf16.mxu0 0
  %173 = vmatpush1.bf16.msra.mxu0 0
  %174 = vmatprep.subr.bf16.mxu0 0
  %175 = vmatpush1.bf16.msra.mxu0 0
  %176 = vmatprep.subr.bf16.mxu0 0
  %177 = vmatpush1.bf16.msra.mxu0 0
  %178 = vmatprep.subr.bf16.mxu0 0
  %179 = vmatpush1.bf16.msra.mxu0 0
  %180 = vmatprep.subr.bf16.mxu0 0
  %181 = vmatpush1.bf16.msra.mxu0 0
  %182 = vmatprep.subr.bf16.mxu0 0
  %183 = vmatpush1.bf16.msra.mxu0 0
  %184 = vmatprep.subr.bf16.mxu0 0
  %185 = vmatpush1.bf16.msra.mxu0 0
  %186 = vmatprep.subr.bf16.mxu0 0
  %187 = vmatpush1.bf16.msra.mxu0 0
  %188 = vmatprep.subr.bf16.mxu0 0
  %189 = vmatpush1.bf16.msra.mxu0 0
  %190 = vmatprep.subr.bf16.mxu0 0
  %191 = vmatpush1.bf16.msra.mxu0 0
  %192 = vmatprep.subr.bf16.mxu0 0
  %193 = vmatpush1.bf16.msra.mxu0 0
  %194 = vmatprep.subr.bf16.mxu0 0
  %195 = vmatpush1.bf16.msra.mxu0 0
  %196 = vmatprep.mubr.bf16.mxu0 0
  %197 = vmatmul.mubr.bf16.gmra.mrb[0].mxu0 %v162
  %v198 = vpop.f32.mrb[0].mxu0
  %v199 = vadd.f32 0.0, %v198
  %v200 = vpop.f32.mrb[0].mxu0
  %v201 = vpop.f32.mrb[0].mxu0
  %v202 = vadd.f32 0.0, %v201
  %v203 = vpop.f32.mrb[0].mxu0
  %204 = vdwg.mxu0
  %s205 = scalar_lea.vmem %s2, 16
  %v206 = vld [vmem:[%s205] sm:$0xf]
  %v207 = vld [vmem:[%s205 + $0x4] sm:$0xf]
  %v208 = vld [vmem:[%s205 + $0x8] sm:$0xf]
  %v209 = vld [vmem:[%s205 + $0xc] sm:$0xf]
  %v214 = vunpack.c.l.b16 %v206
  %v215 = vunpack.c.l.b16 %v207
  %v216 = vunpack.c.l.b16 %v208
  %v217 = vunpack.c.l.b16 %v209
  %v218 = vpack.c.b16 %v215, %v214
  %v219 = vpack.c.b16 %v217, %v216
  %222 = vmatprep.subr.bf16.mxu0 0
  %223 = vmatpush1.bf16.msra.mxu0 %v218
  %224 = vmatprep.subr.bf16.mxu0 0
  %225 = vmatpush1.bf16.msra.mxu0 %v219
  %226 = vmatprep.subr.bf16.mxu0 0
  %227 = vmatpush1.bf16.msra.mxu0 0
  %228 = vmatprep.subr.bf16.mxu0 0
  %229 = vmatpush1.bf16.msra.mxu0 0
  %230 = vmatprep.subr.bf16.mxu0 0
  %231 = vmatpush1.bf16.msra.mxu0 0
  %232 = vmatprep.subr.bf16.mxu0 0
  %233 = vmatpush1.bf16.msra.mxu0 0
  %234 = vmatprep.subr.bf16.mxu0 0
  %235 = vmatpush1.bf16.msra.mxu0 0
  %236 = vmatprep.subr.bf16.mxu0 0
  %237 = vmatpush1.bf16.msra.mxu0 0
  %238 = vmatprep.subr.bf16.mxu0 0
  %239 = vmatpush1.bf16.msra.mxu0 0
  %240 = vmatprep.subr.bf16.mxu0 0
  %241 = vmatpush1.bf16.msra.mxu0 0
  %242 = vmatprep.subr.bf16.mxu0 0
  %243 = vmatpush1.bf16.msra.mxu0 0
  %244 = vmatprep.subr.bf16.mxu0 0
  %245 = vmatpush1.bf16.msra.mxu0 0
  %246 = vmatprep.subr.bf16.mxu0 0
  %247 = vmatpush1.bf16.msra.mxu0 0
  %248 = vmatprep.subr.bf16.mxu0 0
  %249 = vmatpush1.bf16.msra.mxu0 0
  %250 = vmatprep.subr.bf16.mxu0 0
  %251 = vmatpush1.bf16.msra.mxu0 0
  %252 = vmatprep.subr.bf16.mxu0 0
  %253 = vmatpush1.bf16.msra.mxu0 0
  %254 = vmatprep.mubr.bf16.mxu0 0
  %255 = vmatmul.mubr.bf16.gmra.mrb[0].mxu0 %v162
  %v256 = vpop.f32.mrb[0].mxu0
  %v257 = vadd.f32 0.0, %v256
  %v258 = vpop.f32.mrb[0].mxu0
  %v259 = vpop.f32.mrb[0].mxu0
  %v260 = vadd.f32 0.0, %v259
  %v261 = vpop.f32.mrb[0].mxu0
  %262 = vdwg.mxu0
  %s263 = scalar_lea.vmem %s2, 32
  %v264 = vld [vmem:[%s263] sm:$0xf]
  %v265 = vld [vmem:[%s263 + $0x4] sm:$0xf]
  %v266 = vld [vmem:[%s263 + $0x8] sm:$0xf]
  %v267 = vld [vmem:[%s263 + $0xc] sm:$0xf]
  %v272 = vunpack.c.l.b16 %v264
  %v273 = vunpack.c.l.b16 %v265
  %v274 = vunpack.c.l.b16 %v266
  %v275 = vunpack.c.l.b16 %v267
  %v276 = vpack.c.b16 %v273, %v272
  %v277 = vpack.c.b16 %v275, %v274
  %280 = vmatprep.subr.bf16.mxu0 0
  %281 = vmatpush1.bf16.msra.mxu0 %v276
  %282 = vmatprep.subr.bf16.mxu0 0
  %283 = vmatpush1.bf16.msra.mxu0 %v277
  %284 = vmatprep.subr.bf16.mxu0 0
  %285 = vmatpush1.bf16.msra.mxu0 0
  %286 = vmatprep.subr.bf16.mxu0 0
  %287 = vmatpush1.bf16.msra.mxu0 0
  %288 = vmatprep.subr.bf16.mxu0 0
  %289 = vmatpush1.bf16.msra.mxu0 0
  %290 = vmatprep.subr.bf16.mxu0 0
  %291 = vmatpush1.bf16.msra.mxu0 0
  %292 = vmatprep.subr.bf16.mxu0 0
  %293 = vmatpush1.bf16.msra.mxu0 0
  %294 = vmatprep.subr.bf16.mxu0 0
  %295 = vmatpush1.bf16.msra.mxu0 0
  %296 = vmatprep.subr.bf16.mxu0 0
  %297 = vmatpush1.bf16.msra.mxu0 0
  %298 = vmatprep.subr.bf16.mxu0 0
  %299 = vmatpush1.bf16.msra.mxu0 0
  %300 = vmatprep.subr.bf16.mxu0 0
  %301 = vmatpush1.bf16.msra.mxu0 0
  %302 = vmatprep.subr.bf16.mxu0 0
  %303 = vmatpush1.bf16.msra.mxu0 0
  %304 = vmatprep.subr.bf16.mxu0 0
  %305 = vmatpush1.bf16.msra.mxu0 0
  %306 = vmatprep.subr.bf16.mxu0 0
  %307 = vmatpush1.bf16.msra.mxu0 0
  %308 = vmatprep.subr.bf16.mxu0 0
  %309 = vmatpush1.bf16.msra.mxu0 0
  %310 = vmatprep.subr.bf16.mxu0 0
  %311 = vmatpush1.bf16.msra.mxu0 0
  %312 = vmatprep.mubr.bf16.mxu0 0
  %313 = vmatmul.mubr.bf16.gmra.mrb[0].mxu0 %v162
  %v314 = vpop.f32.mrb[0].mxu0
  %v315 = vadd.f32 0.0, %v314
  %v316 = vpop.f32.mrb[0].mxu0
  %v317 = vpop.f32.mrb[0].mxu0
  %v318 = vadd.f32 0.0, %v317
  %v319 = vpop.f32.mrb[0].mxu0
  %320 = vdwg.mxu0
  %v321 = vlaneseq
  %v322 = vshrl.u32 %v321, 7
  %v323 = vadd.s32 %v322, 8
  %vm324 = vcmp.lt.s32.totalorder %v322, 0
  %v325 = vsub.s32 0, %v322
  %v326 = vsel %vm324, %v325, %v322
  %v327 = vshrl.u32 %v326, 3
  %v328 = vand.u32 %v326, 7
  %v329 = vsub.s32 0, %v328
  %v330 = vsel %vm324, %v329, %v328
  %vm331 = vcmp.lt.s32.totalorder %v323, 0
  %v332 = vsub.s32 0, %v323
  %v333 = vsel %vm331, %v332, %v323
  %v334 = vshrl.u32 %v333, 3
  %v335 = vand.u32 %v333, 7
  %v336 = vsub.s32 0, %v335
  %v337 = vsel %vm331, %v336, %v335
  %vm338 = vcmp.ne.s32.totalorder %v330, 0
  %vm339 = vcmp.ne.s32.totalorder %v337, 0
  %vm340 = vcmp.lt.s32.totalorder %v330, 0
  %vm341 = vcmp.lt.s32.totalorder %v337, 0
  %vm342 = vmand %vm340, %vm338
  %vm343 = vmand %vm341, %vm339
  %v344 = vadd.s32 %v330, 8
  %v345 = vadd.s32 %v337, 8
  %v346 = vsel %vm342, %v344, %v330
  %v347 = vsel %vm343, %v345, %v337
  %vm348 = vcmp.eq.s32.totalorder %v346, 0
  %vm349 = vcmp.eq.s32.totalorder %v347, 0
  %v350 = vrot.slane %v199, 7
  %v351 = vrot.slane %v202, 7
  %vm352 = vcmp.lt.s32.totalorder %v322, 1
  %v353 = vsel %vm352, %v350, %v351
  %v354 = vsel %vm352, %v351, %v350
  %v355 = vsel %vm348, 0.0, %v354
  %v356 = vsel %vm349, 0.0, %v353
  %vm357 = vcmp.eq.s32.totalorder %v346, 7
  %vm358 = vcmp.eq.s32.totalorder %v347, 7
  %v359 = vrot.slane %v315, 1
  %v360 = vrot.slane %v318, 1
  %vm361 = vcmp.lt.s32.totalorder %v322, 7
  %v362 = vsel %vm361, %v359, %v360
  %v363 = vsel %vm361, %v360, %v359
  %v364 = vsel %vm357, 0.0, %v362
  %v365 = vsel %vm358, 0.0, %v363
  %v366 = vadd.f32 %v355, %v257
  %v367 = vadd.f32 %v356, %v260
  %v368 = vadd.f32 %v366, %v364
  %v369 = vadd.f32 %v367, %v365
  %v370 = vld [vmem:[%s3] sm:$0x1]
  %v372 = vlaneseq
  %v373 = vshrl.u32 %v372, 7
  %v374 = vsub.s32 0, %v373
  %v375 = vrot.slane %v370, %v374
  %v377 = vmul.f32 %v368, %v375
  %v378 = vmul.f32 %v369, %v375
  %v379 = vld [vmem:[%s4] sm:$0x1]
  %v381 = vlaneseq
  %v382 = vshrl.u32 %v381, 7
  %v383 = vsub.s32 0, %v382
  %v384 = vrot.slane %v379, %v383
  %v386 = vadd.f32 %v377, %v384
  %v387 = vadd.f32 %v378, %v384
  %v388 = vmax.f32 %v386, 0.0
  %v389 = vmax.f32 %v387, 0.0
  %v390 = vpack.c.bf16 %v389, %v388
  %v391 = vld [vmem:[%s5] sm:$0xf]
  %v392 = vld [vmem:[%s5 + $0x4] sm:$0xf]
  %v393 = vld [vmem:[%s5 + $0x8] sm:$0xf]
  %v394 = vld [vmem:[%s5 + $0xc] sm:$0xf]
  %v395 = vld [vmem:[%s5 + $0x10] sm:$0xf]
  %v396 = vld [vmem:[%s5 + $0x14] sm:$0xf]
  %v397 = vld [vmem:[%s5 + $0x18] sm:$0xf]
  %v398 = vld [vmem:[%s5 + $0x1c] sm:$0xf]
  %v407 = vunpack.c.l.b16 %v391
  %v408 = vunpack.c.l.b16 %v392
  %v409 = vunpack.c.l.b16 %v393
  %v410 = vunpack.c.l.b16 %v394
  %v411 = vunpack.c.l.b16 %v395
  %v412 = vunpack.c.l.b16 %v396
  %v413 = vunpack.c.l.b16 %v397
  %v414 = vunpack.c.l.b16 %v398
  %v415 = vpack.c.b16 %v408, %v407
  %v416 = vpack.c.b16 %v410, %v409
  %v417 = vpack.c.b16 %v412, %v411
  %v418 = vpack.c.b16 %v414, %v413
  %v424 = vsel %vm98, %v390, 0
  %426 = vmatprep.subr.bf16.mxu0 0
  %427 = vmatpush1.bf16.msra.mxu0 %v415
  %428 = vmatprep.subr.bf16.mxu0 0
  %429 = vmatpush1.bf16.msra.mxu0 %v416
  %430 = vmatprep.subr.bf16.mxu0 0
  %431 = vmatpush1.bf16.msra.mxu0 %v417
  %432 = vmatprep.subr.bf16.mxu0 0
  %433 = vmatpush1.bf16.msra.mxu0 %v418
  %434 = vmatprep.subr.bf16.mxu0 0
  %435 = vmatpush1.bf16.msra.mxu0 0
  %436 = vmatprep.subr.bf16.mxu0 0
  %437 = vmatpush1.bf16.msra.mxu0 0
  %438 = vmatprep.subr.bf16.mxu0 0
  %439 = vmatpush1.bf16.msra.mxu0 0
  %440 = vmatprep.subr.bf16.mxu0 0
  %441 = vmatpush1.bf16.msra.mxu0 0
  %442 = vmatprep.subr.bf16.mxu0 0
  %443 = vmatpush1.bf16.msra.mxu0 0
  %444 = vmatprep.subr.bf16.mxu0 0
  %445 = vmatpush1.bf16.msra.mxu0 0
  %446 = vmatprep.subr.bf16.mxu0 0
  %447 = vmatpush1.bf16.msra.mxu0 0
  %448 = vmatprep.subr.bf16.mxu0 0
  %449 = vmatpush1.bf16.msra.mxu0 0
  %450 = vmatprep.subr.bf16.mxu0 0
  %451 = vmatpush1.bf16.msra.mxu0 0
  %452 = vmatprep.subr.bf16.mxu0 0
  %453 = vmatpush1.bf16.msra.mxu0 0
  %454 = vmatprep.subr.bf16.mxu0 0
  %455 = vmatpush1.bf16.msra.mxu0 0
  %456 = vmatprep.subr.bf16.mxu0 0
  %457 = vmatpush1.bf16.msra.mxu0 0
  %458 = vmatprep.mubr.bf16.mxu0 0
  %459 = vmatmul.mubr.bf16.gmra.mrb[0].mxu0 %v424
  %v460 = vpop.f32.mrb[0].mxu0
  %v461 = vadd.f32 0.0, %v460
  %v462 = vpop.f32.mrb[0].mxu0
  %v463 = vpop.f32.mrb[0].mxu0
  %v464 = vadd.f32 0.0, %v463
  %v465 = vpop.f32.mrb[0].mxu0
  %466 = vdwg.mxu0
  %s467 = scalar_lea.vmem %s5, 32
  %v468 = vld [vmem:[%s467] sm:$0xf]
  %v469 = vld [vmem:[%s467 + $0x4] sm:$0xf]
  %v470 = vld [vmem:[%s467 + $0x8] sm:$0xf]
  %v471 = vld [vmem:[%s467 + $0xc] sm:$0xf]
  %v472 = vld [vmem:[%s467 + $0x10] sm:$0xf]
  %v473 = vld [vmem:[%s467 + $0x14] sm:$0xf]
  %v474 = vld [vmem:[%s467 + $0x18] sm:$0xf]
  %v475 = vld [vmem:[%s467 + $0x1c] sm:$0xf]
  %v484 = vunpack.c.l.b16 %v468
  %v485 = vunpack.c.l.b16 %v469
  %v486 = vunpack.c.l.b16 %v470
  %v487 = vunpack.c.l.b16 %v471
  %v488 = vunpack.c.l.b16 %v472
  %v489 = vunpack.c.l.b16 %v473
  %v490 = vunpack.c.l.b16 %v474
  %v491 = vunpack.c.l.b16 %v475
  %v492 = vpack.c.b16 %v485, %v484
  %v493 = vpack.c.b16 %v487, %v486
  %v494 = vpack.c.b16 %v489, %v488
  %v495 = vpack.c.b16 %v491, %v490
  %500 = vmatprep.subr.bf16.mxu0 0
  %501 = vmatpush1.bf16.msra.mxu0 %v492
  %502 = vmatprep.subr.bf16.mxu0 0
  %503 = vmatpush1.bf16.msra.mxu0 %v493
  %504 = vmatprep.subr.bf16.mxu0 0
  %505 = vmatpush1.bf16.msra.mxu0 %v494
  %506 = vmatprep.subr.bf16.mxu0 0
  %507 = vmatpush1.bf16.msra.mxu0 %v495
  %508 = vmatprep.subr.bf16.mxu0 0
  %509 = vmatpush1.bf16.msra.mxu0 0
  %510 = vmatprep.subr.bf16.mxu0 0
  %511 = vmatpush1.bf16.msra.mxu0 0
  %512 = vmatprep.subr.bf16.mxu0 0
  %513 = vmatpush1.bf16.msra.mxu0 0
  %514 = vmatprep.subr.bf16.mxu0 0
  %515 = vmatpush1.bf16.msra.mxu0 0
  %516 = vmatprep.subr.bf16.mxu0 0
  %517 = vmatpush1.bf16.msra.mxu0 0
  %518 = vmatprep.subr.bf16.mxu0 0
  %519 = vmatpush1.bf16.msra.mxu0 0
  %520 = vmatprep.subr.bf16.mxu0 0
  %521 = vmatpush1.bf16.msra.mxu0 0
  %522 = vmatprep.subr.bf16.mxu0 0
  %523 = vmatpush1.bf16.msra.mxu0 0
  %524 = vmatprep.subr.bf16.mxu0 0
  %525 = vmatpush1.bf16.msra.mxu0 0
  %526 = vmatprep.subr.bf16.mxu0 0
  %527 = vmatpush1.bf16.msra.mxu0 0
  %528 = vmatprep.subr.bf16.mxu0 0
  %529 = vmatpush1.bf16.msra.mxu0 0
  %530 = vmatprep.subr.bf16.mxu0 0
  %531 = vmatpush1.bf16.msra.mxu0 0
  %532 = vmatprep.mubr.bf16.mxu0 0
  %533 = vmatmul.mubr.bf16.gmra.mrb[0].mxu0 %v424
  %v534 = vpop.f32.mrb[0].mxu0
  %v535 = vadd.f32 0.0, %v534
  %v536 = vpop.f32.mrb[0].mxu0
  %v537 = vpop.f32.mrb[0].mxu0
  %v538 = vadd.f32 0.0, %v537
  %v539 = vpop.f32.mrb[0].mxu0
  %540 = vdwg.mxu0
  %s541 = scalar_lea.vmem %s5, 64
  %v542 = vld [vmem:[%s541] sm:$0xf]
  %v543 = vld [vmem:[%s541 + $0x4] sm:$0xf]
  %v544 = vld [vmem:[%s541 + $0x8] sm:$0xf]
  %v545 = vld [vmem:[%s541 + $0xc] sm:$0xf]
  %v546 = vld [vmem:[%s541 + $0x10] sm:$0xf]
  %v547 = vld [vmem:[%s541 + $0x14] sm:$0xf]
  %v548 = vld [vmem:[%s541 + $0x18] sm:$0xf]
  %v549 = vld [vmem:[%s541 + $0x1c] sm:$0xf]
  %v558 = vunpack.c.l.b16 %v542
  %v559 = vunpack.c.l.b16 %v543
  %v560 = vunpack.c.l.b16 %v544
  %v561 = vunpack.c.l.b16 %v545
  %v562 = vunpack.c.l.b16 %v546
  %v563 = vunpack.c.l.b16 %v547
  %v564 = vunpack.c.l.b16 %v548
  %v565 = vunpack.c.l.b16 %v549
  %v566 = vpack.c.b16 %v559, %v558
  %v567 = vpack.c.b16 %v561, %v560
  %v568 = vpack.c.b16 %v563, %v562
  %v569 = vpack.c.b16 %v565, %v564
  %574 = vmatprep.subr.bf16.mxu0 0
  %575 = vmatpush1.bf16.msra.mxu0 %v566
  %576 = vmatprep.subr.bf16.mxu0 0
  %577 = vmatpush1.bf16.msra.mxu0 %v567
  %578 = vmatprep.subr.bf16.mxu0 0
  %579 = vmatpush1.bf16.msra.mxu0 %v568
  %580 = vmatprep.subr.bf16.mxu0 0
  %581 = vmatpush1.bf16.msra.mxu0 %v569
  %582 = vmatprep.subr.bf16.mxu0 0
  %583 = vmatpush1.bf16.msra.mxu0 0
  %584 = vmatprep.subr.bf16.mxu0 0
  %585 = vmatpush1.bf16.msra.mxu0 0
  %586 = vmatprep.subr.bf16.mxu0 0
  %587 = vmatpush1.bf16.msra.mxu0 0
  %588 = vmatprep.subr.bf16.mxu0 0
  %589 = vmatpush1.bf16.msra.mxu0 0
  %590 = vmatprep.subr.bf16.mxu0 0
  %591 = vmatpush1.bf16.msra.mxu0 0
  %592 = vmatprep.subr.bf16.mxu0 0
  %593 = vmatpush1.bf16.msra.mxu0 0
  %594 = vmatprep.subr.bf16.mxu0 0
  %595 = vmatpush1.bf16.msra.mxu0 0
  %596 = vmatprep.subr.bf16.mxu0 0
  %597 = vmatpush1.bf16.msra.mxu0 0
  %598 = vmatprep.subr.bf16.mxu0 0
  %599 = vmatpush1.bf16.msra.mxu0 0
  %600 = vmatprep.subr.bf16.mxu0 0
  %601 = vmatpush1.bf16.msra.mxu0 0
  %602 = vmatprep.subr.bf16.mxu0 0
  %603 = vmatpush1.bf16.msra.mxu0 0
  %604 = vmatprep.subr.bf16.mxu0 0
  %605 = vmatpush1.bf16.msra.mxu0 0
  %606 = vmatprep.mubr.bf16.mxu0 0
  %607 = vmatmul.mubr.bf16.gmra.mrb[0].mxu0 %v424
  %v608 = vpop.f32.mrb[0].mxu0
  %v609 = vadd.f32 0.0, %v608
  %v610 = vpop.f32.mrb[0].mxu0
  %v611 = vpop.f32.mrb[0].mxu0
  %v612 = vadd.f32 0.0, %v611
  %v613 = vpop.f32.mrb[0].mxu0
  %614 = vdwg.mxu0
  %v615 = vrot.slane %v461, 7
  %v616 = vrot.slane %v464, 7
  %v617 = vsel %vm352, %v615, %v616
  %v618 = vsel %vm352, %v616, %v615
  %v619 = vsel %vm348, 0.0, %v618
  %v620 = vsel %vm349, 0.0, %v617
  %v621 = vrot.slane %v609, 1
  %v622 = vrot.slane %v612, 1
  %v623 = vsel %vm361, %v621, %v622
  %v624 = vsel %vm361, %v622, %v621
  %v625 = vsel %vm357, 0.0, %v623
  %v626 = vsel %vm358, 0.0, %v624
  %v627 = vadd.f32 %v619, %v535
  %v628 = vadd.f32 %v620, %v538
  %v629 = vadd.f32 %v627, %v625
  %v630 = vadd.f32 %v628, %v626
  %v631 = vld [vmem:[%s6] sm:$0x1]
  %v633 = vlaneseq
  %v634 = vshrl.u32 %v633, 7
  %v635 = vsub.s32 0, %v634
  %v636 = vrot.slane %v631, %v635
  %v638 = vmul.f32 %v629, %v636
  %v639 = vmul.f32 %v630, %v636
  %v640 = vld [vmem:[%s7] sm:$0x1]
  %v642 = vlaneseq
  %v643 = vshrl.u32 %v642, 7
  %v644 = vsub.s32 0, %v643
  %v645 = vrot.slane %v640, %v644
  %v647 = vadd.f32 %v638, %v645
  %v648 = vadd.f32 %v639, %v645
  %v649 = vmax.f32 %v647, 0.0
  %v650 = vmax.f32 %v648, 0.0
  %651 = vst.msk [vmem:[%s8] sm:$0xff] %vm98, %v649
  %652 = vst.msk [vmem:[%s8 + $0x8] sm:$0xff] %vm98, %v650
  // Predicated region
  $region34: #{_forward.1} parent=0 // pred_check
    _
  $region35: #{_forward.1} parent=0 // pred_check_branch
    %654 = sbr.rel (0) target = $region37
  $region36: #{_forward.1} parent=0 // pred_region
    _
  $region37: #{_forward.1} parent=0 // pred_fallthru
    _
  // Predicated region
  $region38: #{_forward.1} parent=0 // pred_check
    _
  $region39: #{_forward.1} parent=0 // pred_check_branch
    %656 = sbr.rel (0) target = $region41
  $region40: #{_forward.1} parent=0 // pred_region
    _
  $region41: #{_forward.1} parent=0 // pred_fallthru
    _

</llo_original>
